<compile_context>
chip_gen: v6e
topology: v6e:2x2x1
jax: 0.10.0
libtpu: 0.0.40
codegen_flags: <defaults>
</compile_context>

<pallas_src>
import functools

import jax
import jax.numpy as jnp
from jax.experimental import pallas as pl
from jax.experimental.pallas import tpu as pltpu


def _round_up(v, m):
    return (v + m - 1) // m * m


def _cdiv(a, b):
    return (a + b - 1) // b


def _vmem_capacity_bytes():
    """Per-core VMEM capacity; conservative 64 MiB fallback (v7x-sized)."""
    try:
        info = pltpu.get_tpu_info()
        for attr in ("vmem_capacity_bytes", "vmem_bytes", "vmem_size_bytes"):
            v = getattr(info, attr, None)
            if v:
                return int(v)
    except Exception:
        pass
    return 64 * 2 ** 20


def _num_tensorcores():
    """TensorCores per chip; defaults to 1 (safe: never splits the batch)."""
    try:
        info = pltpu.get_tpu_info()
        for attr in ("num_cores", "core_count", "num_tensorcores", "tensorcore_count"):
            v = getattr(info, attr, None)
            if v:
                return int(v)
    except Exception:
        pass
    return 1


def _rnn_chunk_kernel(x_ref, w_ih_ref, w_hh_ref, b_ref, w_mlp_ref, b_mlp_ref,
                      y_ref, h_ref, hall_ref, *, t_total, unroll):
    """One (batch-block, time-chunk) grid step.

    x_ref:     (Bc, Tc)      input chunk, time on the 128-lane axis (RNN input width 1)
    w_ih_ref:  (1, Hp)       input->hidden weights (row), f32, zero padded (resident VMEM)
    w_hh_ref:  (Hp, Hp)      hidden->hidden weights (pre-transposed), matmul dtype (resident VMEM)
    b_ref:     (1, Hp)       b_ih + b_hh, f32, zero padded (resident VMEM)
    w_mlp_ref: (1, Hp)       output projection weights (row), f32, zero padded (resident VMEM)
    b_mlp_ref: (1,) SMEM     output projection bias (scalar)
    y_ref:     (Bc, Tc)      output chunk, time on the 128-lane axis
    h_ref:     (Bc, Hp)      hidden state, persists across time chunks
    hall_ref:  (Tc, Bc, Hp)  chunk staging: input projection, then h_t history
    """
    tc = hall_ref.shape[0]
    ci = pl.program_id(1)                  # time-chunk index (innermost, sequential)

    @pl.when(ci == 0)
    def _():
        h_ref[...] = jnp.zeros_like(h_ref)

    # (Bc, Tc) -> (Tc, Bc): one small XLU transpose per chunk; keeps the HBM/VMEM
    # blocks lane-dense instead of carrying a width-1 lane axis.
    x_tb = x_ref[...].T

    # Hoisted input projection + combined RNN bias for the whole chunk.  The RNN
    # input width is 1, so x_t @ W_ih is an outer product: one vectorised VPU op
    # replaces Tc degenerate K=1 MXU matmuls.
    hall_ref[...] = (x_tb[:, :, None] * w_ih_ref[...][None, :, :]
                     + b_ref[...][None, :, :])

    w_hh = w_hh_ref[...]                   # bf16 (default) or f32
    mm_dtype = w_hh.dtype

    def step(t, h):
        # Only this (Bc, Hp) @ (Hp, Hp) matmul is on the sequential critical path;
        # bf16 operands + f32 accumulation keep it a single MXU pass.
        h_new = jnp.tanh(hall_ref[t]
                         + jnp.dot(h.astype(mm_dtype), w_hh,
                                   preferred_element_type=jnp.float32))
        hall_ref[t] = h_new
        return h_new

    h0 = h_ref[...]
    if t_total % tc == 0:
        # Every chunk is full: static trip count, unrolled for scheduler visibility.
        h_ref[...] = jax.lax.fori_loop(0, tc, step, h0, unroll=unroll)
    else:
        # Last chunk is partial: clamp the trip count so padded time steps cost
        # nothing (the recurrence is strictly serial; dead steps are pure latency).
        steps = jnp.minimum(tc, t_total - ci * tc)
        h_ref[...] = jax.lax.fori_loop(0, steps, step, h0)

    # Output projection hoisted out of the recurrence: one vectorised multiply +
    # lane reduction over the whole chunk (an N=1 GEMM would waste the MXU), then
    # one (Tc, Bc) -> (Bc, Tc) transpose so the store is a full-lane unmasked vst.
    y_tb = jnp.sum(hall_ref[...] * w_mlp_ref[...][None, :, :], axis=-1)   # (Tc, Bc)
    y_ref[...] = (y_tb.T + b_mlp_ref[0]).astype(y_ref.dtype)


@functools.partial(jax.jit,
                   static_argnames=("time_chunk", "batch_block", "matmul_dtype"))
def rnn_forward(x, params, *, time_chunk=None, batch_block=None,
                matmul_dtype=jnp.bfloat16):
    """x: (B, T, 1) float32 -> (B, T, 1) float32 (same math as the torch module).

    matmul_dtype controls the precision of the critical-path h @ W_hh matmul
    (accumulation is always f32): bfloat16 (default, one MXU pass) or float32.
    """
    B, T, _ = x.shape
    w_ih_t, w_hh_t, b_rnn, w_mlp_t, b_mlp = params
    H = w_hh_t.shape[0]
    f32 = jnp.float32

    Hp = _round_up(H, 128)                 # lane-pad hidden size
    cap = _vmem_capacity_bytes()
    cores = _num_tensorcores()

    # ---- Batch blocking.  Split across TensorCores only when they exist; on a
    # single-core chip splitting would just run the serial recurrence twice. ----
    Bp = _round_up(B, 8)
    if batch_block is not None:
        Bc = _round_up(int(batch_block), 8)
    elif cores >= 2 and Bp >= 8 * cores:
        Bc = _round_up(_cdiv(Bp, cores), 8)
    else:
        Bc = Bp
    nb = _cdiv(Bp, Bc)
    Bp = nb * Bc

    # ---- Time chunking (generation-aware: hall + resident weights must fit). ----
    w_itemsize = jnp.dtype(matmul_dtype).itemsize
    bytes_whh = Hp * Hp * w_itemsize                  # resident, single copy
    bytes_small_w = 3 * 8 * Hp * 4                    # (1, Hp) rows, sublane padded
    bytes_fixed = bytes_whh + bytes_small_w + Bc * Hp * 4 + 2 * 2 * Bc * 128 * 4
    bytes_per_t = Bc * Hp * 4 + 4 * Bc * 4            # hall row + x/y block columns
    budget = int(0.6 * cap)
    tc_budget = (budget - bytes_fixed) // bytes_per_t if budget > bytes_fixed else 8
    tc_budget = max(8, tc_budget)

    if time_chunk is not None:
        Tc = T if int(time_chunk) >= T else max(128, _round_up(int(time_chunk), 128))
    elif T <= min(256, tc_budget):
        Tc = T                                        # single chunk, zero time padding
    else:
        Tc = max(128, (min(tc_budget, 512) // 128) * 128)
    nc = _cdiv(T, Tc)
    Tp = nc * Tc

    # fori-loop unroll: keep the live h / hall[t] slices within the 64-vreg budget.
    vregs_h = max(1, (Bc * Hp) // 1024)
    unroll = int(max(1, min(8, Tc, 16 // vregs_h)))

    # ---- Parameter padding (self-consistent: padded hidden lanes stay exactly 0). ----
    w_ih_p = jnp.pad(w_ih_t.astype(f32), ((0, 0), (0, Hp - H)))                   # (1, Hp)
    w_hh_p = jnp.pad(w_hh_t.astype(f32),
                     ((0, Hp - H), (0, Hp - H))).astype(matmul_dtype)             # (Hp, Hp)
    b_p = jnp.pad(b_rnn.astype(f32), ((0, 0), (0, Hp - H)))                       # (1, Hp)
    w_mlp_p = jnp.pad(w_mlp_t.astype(f32).reshape(1, H), ((0, 0), (0, Hp - H)))   # (1, Hp)
    b_mlp_s = jnp.asarray(b_mlp, f32).reshape((1,))                               # SMEM scalar

    # Lane-dense input: (B, T, 1) -> (Bp, Tp), time on the 128-lane axis, zero padded.
    x_bt = jnp.pad(x.astype(f32).reshape(B, T), ((0, Bp - B), (0, Tp - T)))

    # ---- VMEM budget: real estimate, no artificial 64 MiB clamp on 128 MiB parts. ----
    est = (bytes_whh + bytes_small_w
           + 2 * 2 * Bc * max(Tc, 128) * 4            # x & y blocks, double buffered
           + (Tc * Bc * Hp + Bc * Hp) * 4)            # kernel scratch (hall + h)
    vmem_limit = int(min(int(0.92 * cap), max(32 * 2 ** 20, int(1.5 * est))))

    kernel = functools.partial(_rnn_chunk_kernel, t_total=T, unroll=unroll)

    # Loop-invariant weights: untiled, resident in VMEM -> exactly one copy
    # (no double-buffering through the grid pipeline).
    resident = pl.BlockSpec(memory_space=pltpu.MemorySpace.VMEM)

    y_pad = pl.pallas_call(
        kernel,
        out_shape=jax.ShapeDtypeStruct((Bp, Tp), f32),
        grid_spec=pltpu.PrefetchScalarGridSpec(
            num_scalar_prefetch=0,
            grid=(nb, nc),                             # time chunks innermost (sequential)
            in_specs=[
                pl.BlockSpec((Bc, Tc), lambda bi, ci: (bi, ci)),    # x chunk (lane-dense)
                resident,                                           # W_ih row
                resident,                                           # W_hh (matmul dtype)
                resident,                                           # b_ih + b_hh
                resident,                                           # W_mlp row
                pl.BlockSpec(memory_space=pltpu.MemorySpace.SMEM),  # b_mlp scalar
            ],
            out_specs=pl.BlockSpec((Bc, Tc), lambda bi, ci: (bi, ci)),
            scratch_shapes=[
                pltpu.VMEM((Bc, Hp), f32),             # hidden state (persists over chunks)
                pltpu.VMEM((Tc, Bc, Hp), f32),         # per-chunk staging / h_t history
            ],
        ),
        compiler_params=pltpu.CompilerParams(
            dimension_semantics=("parallel", "arbitrary"),   # batch parallel, time sequential
            vmem_limit_bytes=vmem_limit,
        ),
    )(x_bt, w_ih_p, w_hh_p, b_p, w_mlp_p, b_mlp_s)

    # (Bp, Tp) -> (B, T, 1); slicing drops batch/time padding.
    return y_pad[:B, :T][..., None]


def init_params(key, nhid):
    """Deterministic init matching torch shapes: RNN(1, nhid) + Linear(nhid, 1)."""
    k = jax.random.split(key, 6)
    bound = 1.0 / jnp.sqrt(nhid)
    w_ih = jax.random.uniform(k[0], (nhid, 1), jnp.float32, -bound, bound)
    w_hh = jax.random.uniform(k[1], (nhid, nhid), jnp.float32, -bound, bound)
    b_ih = jax.random.uniform(k[2], (nhid,), jnp.float32, -bound, bound)
    b_hh = jax.random.uniform(k[3], (nhid,), jnp.float32, -bound, bound)
    w_mlp = jax.random.uniform(k[4], (1, nhid), jnp.float32, -bound, bound)
    b_mlp = jax.random.uniform(k[5], (1,), jnp.float32, -bound, bound)
    # Pre-transpose / pre-combine for the kernel (unpadded; wrapper pads).
    return (
        w_ih.T,                                   # (1, H)
        w_hh.T,                                   # (H, H)
        (b_ih + b_hh).reshape(1, nhid),           # (1, H)
        w_mlp.T,                                  # (H, 1)
        b_mlp.reshape(1, 1),                      # (1, 1)
    )


def rnn_reference(x, params, matmul_dtype=None):
    """Pure-JAX reference.  matmul_dtype=None -> exact f32 recurrence; otherwise the
    h @ W_hh matmul mirrors the kernel's reduced-precision weights (f32 accumulation)."""
    w_ih_t, w_hh_t, b, w_mlp_t, b_mlp = params
    B, _, _ = x.shape
    H = w_hh_t.shape[0]
    x_tbf = jnp.transpose(x.astype(jnp.float32), (1, 0, 2))   # (T, B, 1)

    if matmul_dtype is None:
        def hh(h):
            return h @ w_hh_t
    else:
        w_hh_m = w_hh_t.astype(matmul_dtype)

        def hh(h):
            return jnp.dot(h.astype(matmul_dtype), w_hh_m,
                           preferred_element_type=jnp.float32)

    def step(h, x_t):
        h_new = jnp.tanh(x_t @ w_ih_t + hh(h) + b)
        return h_new, h_new

    _, ys = jax.lax.scan(step, jnp.zeros((B, H), jnp.float32), x_tbf)
    y = ys @ w_mlp_t + b_mlp                    # (T, B, 1)
    return jnp.transpose(y, (1, 0, 2))          # (B, T, 1)


if __name__ == "__main__":
    key = jax.random.PRNGKey(0)
    kx1, kp1, kx2, kp2, kx3, kp3 = jax.random.split(key, 6)

    # A) Small shapes implied by the module (B=2, T=8, H=32): single time chunk.
    B, T, H = 2, 8, 32
    x1 = jax.random.normal(kx1, (B, T, 1), dtype=jnp.float32)
    p1 = init_params(kp1, H)

    y1_f32 = jax.block_until_ready(rnn_forward(x1, p1, matmul_dtype=jnp.float32))
    assert y1_f32.shape == (B, T, 1)
    assert jnp.allclose(y1_f32, rnn_reference(x1, p1), atol=1e-5, rtol=1e-5), \
        "f32 kernel mismatch vs f32 reference (small)"

    y1 = jax.block_until_ready(rnn_forward(x1, p1))          # bf16 weights (default)
    assert y1.shape == (B, T, 1)
    assert jnp.allclose(y1, rnn_reference(x1, p1, jnp.bfloat16), atol=2e-3, rtol=2e-3), \
        "bf16 kernel mismatch vs bf16-matched reference (small)"
    assert jnp.allclose(y1, rnn_reference(x1, p1), atol=3e-2, rtol=1e-3), \
        "bf16 kernel drifted too far from the f32 reference (small)"

    # B) Chunked, evenly divisible time (static inner-loop path), H padded to 128.
    B2, T2, H2 = 4, 256, 64
    x2 = jax.random.normal(kx2, (B2, T2, 1), dtype=jnp.float32)
    p2 = init_params(kp2, H2)
    y2 = jax.block_until_ready(rnn_forward(x2, p2, time_chunk=128))
    assert y2.shape == (B2, T2, 1)
    assert jnp.allclose(y2, rnn_reference(x2, p2, jnp.bfloat16), atol=2e-3, rtol=2e-3), \
        "bf16 kernel mismatch vs bf16-matched reference (chunked, even)"

    # C) Chunked with a partial last chunk (dynamic trip count), odd batch / H.
    B3, T3, H3 = 3, 200, 96
    x3 = jax.random.normal(kx3, (B3, T3, 1), dtype=jnp.float32)
    p3 = init_params(kp3, H3)
    y3 = jax.block_until_ready(rnn_forward(x3, p3, time_chunk=128))
    assert y3.shape == (B3, T3, 1)
    assert jnp.allclose(y3, rnn_reference(x3, p3, jnp.bfloat16), atol=2e-3, rtol=2e-3), \
        "bf16 kernel mismatch vs bf16-matched reference (chunked, uneven)"

    print("KERNEL_OK")
</pallas_src>

<mosaic_0001>
module attributes {stable_mosaic.version = 11 : i64} {
  func.func @_rnn_chunk_kernel(%arg0: i32, %arg1: i32, %arg2: memref<8x8xf32, #tpu.memory_space<vmem>>, %arg3: memref<1x128xf32, #tpu.memory_space<vmem>>, %arg4: memref<128x128xf32, #tpu.memory_space<vmem>>, %arg5: memref<1x128xf32, #tpu.memory_space<vmem>>, %arg6: memref<1x128xf32, #tpu.memory_space<vmem>>, %arg7: memref<1xf32, #tpu.memory_space<smem>>, %arg8: memref<8x8xf32, #tpu.memory_space<vmem>>, %arg9: memref<8x128xf32, #tpu.memory_space<vmem>>, %arg10: memref<8x8x128xf32, #tpu.memory_space<vmem>>) attributes {dimension_semantics = [#tpu.dimension_semantics<parallel>, #tpu.dimension_semantics<arbitrary>], iteration_bounds = array<i64: 1, 1>, scalar_prefetch = 0 : i64, scratch_operands = 2 : i64, tpu.core_type = #tpu.core_type<tc>, window_params = [{transform_indices = @transform_0, window_bounds = array<i64: 8, 8>}, {pipeline_mode = #tpu.pipeline_mode<synchronous>, transform_indices = @transform_1, window_bounds = array<i64: 1, 128>}, {pipeline_mode = #tpu.pipeline_mode<synchronous>, transform_indices = @transform_2, window_bounds = array<i64: 128, 128>}, {pipeline_mode = #tpu.pipeline_mode<synchronous>, transform_indices = @transform_3, window_bounds = array<i64: 1, 128>}, {pipeline_mode = #tpu.pipeline_mode<synchronous>, transform_indices = @transform_4, window_bounds = array<i64: 1, 128>}, {transform_indices = @transform_5, window_bounds = array<i64: 1>}, {transform_indices = @transform_6, window_bounds = array<i64: 8, 8>}]} {
    %c0_i32 = arith.constant 0 : i32
    %0 = arith.cmpi eq, %arg1, %c0_i32 : i32
    %1 = arith.extui %0 : i1 to i32
    %c0_i32_0 = arith.constant 0 : i32
    %2 = arith.cmpi ne, %1, %c0_i32_0 : i32
    scf.if %2 {
      %cst_64 = arith.constant 0.000000e+00 : f32
      %110 = vector.broadcast %cst_64 : f32 to vector<8x128xf32>
      %c0_65 = arith.constant 0 : index
      %c0_66 = arith.constant 0 : index
      %111 = vector.load %arg9[%c0_65, %c0_66] : memref<8x128xf32, #tpu.memory_space<vmem>>, vector<8x128xf32>
      tpu.vector_store %arg9[%c0_65, %c0_66], %110 {strides = array<i32>} : memref<8x128xf32, #tpu.memory_space<vmem>>, vector<8x128xf32>,
    } else {
    }
    %c0 = arith.constant 0 : index
    %c0_1 = arith.constant 0 : index
    %3 = vector.load %arg2[%c0, %c0_1] : memref<8x8xf32, #tpu.memory_space<vmem>>, vector<8x8xf32>
    %4 = tpu.transpose %3, [1, 0] : vector<8x8xf32> -> vector<8x8xf32>
    %5 = vector.shape_cast %4 : vector<8x8xf32> to vector<8x8x1xf32>
    %c0_2 = arith.constant 0 : index
    %c0_3 = arith.constant 0 : index
    %6 = vector.load %arg3[%c0_2, %c0_3] : memref<1x128xf32, #tpu.memory_space<vmem>>, vector<1x128xf32>
    %7 = vector.shape_cast %6 : vector<1x128xf32> to vector<1x1x128xf32>
    %8 = vector.broadcast %5 : vector<8x8x1xf32> to vector<8x8x128xf32>
    %9 = vector.broadcast %7 : vector<1x1x128xf32> to vector<8x8x128xf32>
    %10 = arith.mulf %8, %9 : vector<8x8x128xf32>
    %c0_4 = arith.constant 0 : index
    %c0_5 = arith.constant 0 : index
    %11 = vector.load %arg5[%c0_4, %c0_5] : memref<1x128xf32, #tpu.memory_space<vmem>>, vector<1x128xf32>
    %12 = vector.shape_cast %11 : vector<1x128xf32> to vector<1x1x128xf32>
    %13 = vector.broadcast %12 : vector<1x1x128xf32> to vector<8x8x128xf32>
    %14 = arith.addf %10, %13 : vector<8x8x128xf32>
    %c0_6 = arith.constant 0 : index
    %c0_7 = arith.constant 0 : index
    %c0_8 = arith.constant 0 : index
    %15 = vector.load %arg10[%c0_6, %c0_7, %c0_8] : memref<8x8x128xf32, #tpu.memory_space<vmem>>, vector<8x8x128xf32>
    tpu.vector_store %arg10[%c0_6, %c0_7, %c0_8], %14 {strides = array<i32>} : memref<8x8x128xf32, #tpu.memory_space<vmem>>, vector<8x8x128xf32>,
    %c0_9 = arith.constant 0 : index
    %c0_10 = arith.constant 0 : index
    %16 = vector.load %arg4[%c0_9, %c0_10] : memref<128x128xf32, #tpu.memory_space<vmem>>, vector<128x128xf32>
    %c0_11 = arith.constant 0 : index
    %c0_12 = arith.constant 0 : index
    %17 = vector.load %arg9[%c0_11, %c0_12] : memref<8x128xf32, #tpu.memory_space<vmem>>, vector<8x128xf32>
    %c0_i32_13 = arith.constant 0 : i32
    %18 = arith.index_cast %c0_i32_13 : i32 to index
    %c0_14 = arith.constant 0 : index
    %c0_15 = arith.constant 0 : index
    %19 = vector.load %arg10[%18, %c0_14, %c0_15] : memref<8x8x128xf32, #tpu.memory_space<vmem>>, vector<1x8x128xf32>
    %20 = vector.shape_cast %19 : vector<1x8x128xf32> to vector<8x128xf32>
    %cst = arith.constant dense<0.000000e+00> : vector<8x128xf32>
    %21 = tpu.matmul %17, %16, %cst {dimension_numbers = #tpu.dot_dimension_numbers<[1], [0], [0], [1], [0, 0, 1, 1], [], []>} : vector<8x128xf32>, vector<128x128xf32>, vector<8x128xf32> -> vector<8x128xf32>
    %22 = arith.addf %20, %21 : vector<8x128xf32>
    %23 = math.tanh %22 : vector<8x128xf32>
    %24 = arith.index_cast %c0_i32_13 : i32 to index
    %c0_16 = arith.constant 0 : index
    %c0_17 = arith.constant 0 : index
    %25 = vector.load %arg10[%24, %c0_16, %c0_17] : memref<8x8x128xf32, #tpu.memory_space<vmem>>, vector<1x8x128xf32>
    %26 = vector.shape_cast %25 : vector<1x8x128xf32> to vector<8x128xf32>
    %27 = vector.shape_cast %23 : vector<8x128xf32> to vector<1x8x128xf32>
    tpu.vector_store %arg10[%24, %c0_16, %c0_17], %27 {strides = array<i32>} : memref<8x8x128xf32, #tpu.memory_space<vmem>>, vector<1x8x128xf32>,
    %c1_i32 = arith.constant 1 : i32
    %28 = arith.index_cast %c1_i32 : i32 to index
    %c0_18 = arith.constant 0 : index
    %c0_19 = arith.constant 0 : index
    %29 = vector.load %arg10[%28, %c0_18, %c0_19] : memref<8x8x128xf32, #tpu.memory_space<vmem>>, vector<1x8x128xf32>
    %30 = vector.shape_cast %29 : vector<1x8x128xf32> to vector<8x128xf32>
    %cst_20 = arith.constant dense<0.000000e+00> : vector<8x128xf32>
    %31 = tpu.matmul %23, %16, %cst_20 {dimension_numbers = #tpu.dot_dimension_numbers<[1], [0], [0], [1], [0, 0, 1, 1], [], []>} : vector<8x128xf32>, vector<128x128xf32>, vector<8x128xf32> -> vector<8x128xf32>
    %32 = arith.addf %30, %31 : vector<8x128xf32>
    %33 = math.tanh %32 : vector<8x128xf32>
    %34 = arith.index_cast %c1_i32 : i32 to index
    %c0_21 = arith.constant 0 : index
    %c0_22 = arith.constant 0 : index
    %35 = vector.load %arg10[%34, %c0_21, %c0_22] : memref<8x8x128xf32, #tpu.memory_space<vmem>>, vector<1x8x128xf32>
    %36 = vector.shape_cast %35 : vector<1x8x128xf32> to vector<8x128xf32>
    %37 = vector.shape_cast %33 : vector<8x128xf32> to vector<1x8x128xf32>
    tpu.vector_store %arg10[%34, %c0_21, %c0_22], %37 {strides = array<i32>} : memref<8x8x128xf32, #tpu.memory_space<vmem>>, vector<1x8x128xf32>,
    %c2_i32 = arith.constant 2 : i32
    %38 = arith.index_cast %c2_i32 : i32 to index
    %c0_23 = arith.constant 0 : index
    %c0_24 = arith.constant 0 : index
    %39 = vector.load %arg10[%38, %c0_23, %c0_24] : memref<8x8x128xf32, #tpu.memory_space<vmem>>, vector<1x8x128xf32>
    %40 = vector.shape_cast %39 : vector<1x8x128xf32> to vector<8x128xf32>
    %cst_25 = arith.constant dense<0.000000e+00> : vector<8x128xf32>
    %41 = tpu.matmul %33, %16, %cst_25 {dimension_numbers = #tpu.dot_dimension_numbers<[1], [0], [0], [1], [0, 0, 1, 1], [], []>} : vector<8x128xf32>, vector<128x128xf32>, vector<8x128xf32> -> vector<8x128xf32>
    %42 = arith.addf %40, %41 : vector<8x128xf32>
    %43 = math.tanh %42 : vector<8x128xf32>
    %44 = arith.index_cast %c2_i32 : i32 to index
    %c0_26 = arith.constant 0 : index
    %c0_27 = arith.constant 0 : index
    %45 = vector.load %arg10[%44, %c0_26, %c0_27] : memref<8x8x128xf32, #tpu.memory_space<vmem>>, vector<1x8x128xf32>
    %46 = vector.shape_cast %45 : vector<1x8x128xf32> to vector<8x128xf32>
    %47 = vector.shape_cast %43 : vector<8x128xf32> to vector<1x8x128xf32>
    tpu.vector_store %arg10[%44, %c0_26, %c0_27], %47 {strides = array<i32>} : memref<8x8x128xf32, #tpu.memory_space<vmem>>, vector<1x8x128xf32>,
    %c3_i32 = arith.constant 3 : i32
    %48 = arith.index_cast %c3_i32 : i32 to index
    %c0_28 = arith.constant 0 : index
    %c0_29 = arith.constant 0 : index
    %49 = vector.load %arg10[%48, %c0_28, %c0_29] : memref<8x8x128xf32, #tpu.memory_space<vmem>>, vector<1x8x128xf32>
    %50 = vector.shape_cast %49 : vector<1x8x128xf32> to vector<8x128xf32>
    %cst_30 = arith.constant dense<0.000000e+00> : vector<8x128xf32>
    %51 = tpu.matmul %43, %16, %cst_30 {dimension_numbers = #tpu.dot_dimension_numbers<[1], [0], [0], [1], [0, 0, 1, 1], [], []>} : vector<8x128xf32>, vector<128x128xf32>, vector<8x128xf32> -> vector<8x128xf32>
    %52 = arith.addf %50, %51 : vector<8x128xf32>
    %53 = math.tanh %52 : vector<8x128xf32>
    %54 = arith.index_cast %c3_i32 : i32 to index
    %c0_31 = arith.constant 0 : index
    %c0_32 = arith.constant 0 : index
    %55 = vector.load %arg10[%54, %c0_31, %c0_32] : memref<8x8x128xf32, #tpu.memory_space<vmem>>, vector<1x8x128xf32>
    %56 = vector.shape_cast %55 : vector<1x8x128xf32> to vector<8x128xf32>
    %57 = vector.shape_cast %53 : vector<8x128xf32> to vector<1x8x128xf32>
    tpu.vector_store %arg10[%54, %c0_31, %c0_32], %57 {strides = array<i32>} : memref<8x8x128xf32, #tpu.memory_space<vmem>>, vector<1x8x128xf32>,
    %c4_i32 = arith.constant 4 : i32
    %58 = arith.index_cast %c4_i32 : i32 to index
    %c0_33 = arith.constant 0 : index
    %c0_34 = arith.constant 0 : index
    %59 = vector.load %arg10[%58, %c0_33, %c0_34] : memref<8x8x128xf32, #tpu.memory_space<vmem>>, vector<1x8x128xf32>
    %60 = vector.shape_cast %59 : vector<1x8x128xf32> to vector<8x128xf32>
    %cst_35 = arith.constant dense<0.000000e+00> : vector<8x128xf32>
    %61 = tpu.matmul %53, %16, %cst_35 {dimension_numbers = #tpu.dot_dimension_numbers<[1], [0], [0], [1], [0, 0, 1, 1], [], []>} : vector<8x128xf32>, vector<128x128xf32>, vector<8x128xf32> -> vector<8x128xf32>
    %62 = arith.addf %60, %61 : vector<8x128xf32>
    %63 = math.tanh %62 : vector<8x128xf32>
    %64 = arith.index_cast %c4_i32 : i32 to index
    %c0_36 = arith.constant 0 : index
    %c0_37 = arith.constant 0 : index
    %65 = vector.load %arg10[%64, %c0_36, %c0_37] : memref<8x8x128xf32, #tpu.memory_space<vmem>>, vector<1x8x128xf32>
    %66 = vector.shape_cast %65 : vector<1x8x128xf32> to vector<8x128xf32>
    %67 = vector.shape_cast %63 : vector<8x128xf32> to vector<1x8x128xf32>
    tpu.vector_store %arg10[%64, %c0_36, %c0_37], %67 {strides = array<i32>} : memref<8x8x128xf32, #tpu.memory_space<vmem>>, vector<1x8x128xf32>,
    %c5_i32 = arith.constant 5 : i32
    %68 = arith.index_cast %c5_i32 : i32 to index
    %c0_38 = arith.constant 0 : index
    %c0_39 = arith.constant 0 : index
    %69 = vector.load %arg10[%68, %c0_38, %c0_39] : memref<8x8x128xf32, #tpu.memory_space<vmem>>, vector<1x8x128xf32>
    %70 = vector.shape_cast %69 : vector<1x8x128xf32> to vector<8x128xf32>
    %cst_40 = arith.constant dense<0.000000e+00> : vector<8x128xf32>
    %71 = tpu.matmul %63, %16, %cst_40 {dimension_numbers = #tpu.dot_dimension_numbers<[1], [0], [0], [1], [0, 0, 1, 1], [], []>} : vector<8x128xf32>, vector<128x128xf32>, vector<8x128xf32> -> vector<8x128xf32>
    %72 = arith.addf %70, %71 : vector<8x128xf32>
    %73 = math.tanh %72 : vector<8x128xf32>
    %74 = arith.index_cast %c5_i32 : i32 to index
    %c0_41 = arith.constant 0 : index
    %c0_42 = arith.constant 0 : index
    %75 = vector.load %arg10[%74, %c0_41, %c0_42] : memref<8x8x128xf32, #tpu.memory_space<vmem>>, vector<1x8x128xf32>
    %76 = vector.shape_cast %75 : vector<1x8x128xf32> to vector<8x128xf32>
    %77 = vector.shape_cast %73 : vector<8x128xf32> to vector<1x8x128xf32>
    tpu.vector_store %arg10[%74, %c0_41, %c0_42], %77 {strides = array<i32>} : memref<8x8x128xf32, #tpu.memory_space<vmem>>, vector<1x8x128xf32>,
    %c6_i32 = arith.constant 6 : i32
    %78 = arith.index_cast %c6_i32 : i32 to index
    %c0_43 = arith.constant 0 : index
    %c0_44 = arith.constant 0 : index
    %79 = vector.load %arg10[%78, %c0_43, %c0_44] : memref<8x8x128xf32, #tpu.memory_space<vmem>>, vector<1x8x128xf32>
    %80 = vector.shape_cast %79 : vector<1x8x128xf32> to vector<8x128xf32>
    %cst_45 = arith.constant dense<0.000000e+00> : vector<8x128xf32>
    %81 = tpu.matmul %73, %16, %cst_45 {dimension_numbers = #tpu.dot_dimension_numbers<[1], [0], [0], [1], [0, 0, 1, 1], [], []>} : vector<8x128xf32>, vector<128x128xf32>, vector<8x128xf32> -> vector<8x128xf32>
    %82 = arith.addf %80, %81 : vector<8x128xf32>
    %83 = math.tanh %82 : vector<8x128xf32>
    %84 = arith.index_cast %c6_i32 : i32 to index
    %c0_46 = arith.constant 0 : index
    %c0_47 = arith.constant 0 : index
    %85 = vector.load %arg10[%84, %c0_46, %c0_47] : memref<8x8x128xf32, #tpu.memory_space<vmem>>, vector<1x8x128xf32>
    %86 = vector.shape_cast %85 : vector<1x8x128xf32> to vector<8x128xf32>
    %87 = vector.shape_cast %83 : vector<8x128xf32> to vector<1x8x128xf32>
    tpu.vector_store %arg10[%84, %c0_46, %c0_47], %87 {strides = array<i32>} : memref<8x8x128xf32, #tpu.memory_space<vmem>>, vector<1x8x128xf32>,
    %c7_i32 = arith.constant 7 : i32
    %88 = arith.index_cast %c7_i32 : i32 to index
    %c0_48 = arith.constant 0 : index
    %c0_49 = arith.constant 0 : index
    %89 = vector.load %arg10[%88, %c0_48, %c0_49] : memref<8x8x128xf32, #tpu.memory_space<vmem>>, vector<1x8x128xf32>
    %90 = vector.shape_cast %89 : vector<1x8x128xf32> to vector<8x128xf32>
    %cst_50 = arith.constant dense<0.000000e+00> : vector<8x128xf32>
    %91 = tpu.matmul %83, %16, %cst_50 {dimension_numbers = #tpu.dot_dimension_numbers<[1], [0], [0], [1], [0, 0, 1, 1], [], []>} : vector<8x128xf32>, vector<128x128xf32>, vector<8x128xf32> -> vector<8x128xf32>
    %92 = arith.addf %90, %91 : vector<8x128xf32>
    %93 = math.tanh %92 : vector<8x128xf32>
    %94 = arith.index_cast %c7_i32 : i32 to index
    %c0_51 = arith.constant 0 : index
    %c0_52 = arith.constant 0 : index
    %95 = vector.load %arg10[%94, %c0_51, %c0_52] : memref<8x8x128xf32, #tpu.memory_space<vmem>>, vector<1x8x128xf32>
    %96 = vector.shape_cast %95 : vector<1x8x128xf32> to vector<8x128xf32>
    %97 = vector.shape_cast %93 : vector<8x128xf32> to vector<1x8x128xf32>
    tpu.vector_store %arg10[%94, %c0_51, %c0_52], %97 {strides = array<i32>} : memref<8x8x128xf32, #tpu.memory_space<vmem>>, vector<1x8x128xf32>,
    %c8_i32 = arith.constant 8 : i32
    %c0_53 = arith.constant 0 : index
    %c0_54 = arith.constant 0 : index
    %98 = vector.load %arg9[%c0_53, %c0_54] : memref<8x128xf32, #tpu.memory_space<vmem>>, vector<8x128xf32>
    tpu.vector_store %arg9[%c0_53, %c0_54], %93 {strides = array<i32>} : memref<8x128xf32, #tpu.memory_space<vmem>>, vector<8x128xf32>,
    %c0_55 = arith.constant 0 : index
    %c0_56 = arith.constant 0 : index
    %c0_57 = arith.constant 0 : index
    %99 = vector.load %arg10[%c0_55, %c0_56, %c0_57] : memref<8x8x128xf32, #tpu.memory_space<vmem>>, vector<8x8x128xf32>
    %c0_58 = arith.constant 0 : index
    %c0_59 = arith.constant 0 : index
    %100 = vector.load %arg6[%c0_58, %c0_59] : memref<1x128xf32, #tpu.memory_space<vmem>>, vector<1x128xf32>
    %101 = vector.shape_cast %100 : vector<1x128xf32> to vector<1x1x128xf32>
    %102 = vector.broadcast %101 : vector<1x1x128xf32> to vector<8x8x128xf32>
    %103 = arith.mulf %99, %102 : vector<8x8x128xf32>
    %cst_60 = arith.constant dense<0.000000e+00> : vector<8x8xf32>
    %104 = vector.multi_reduction <add>, %103, %cst_60 [2] : vector<8x8x128xf32> to vector<8x8xf32>
    %105 = tpu.transpose %104, [1, 0] : vector<8x8xf32> -> vector<8x8xf32>
    %c0_61 = arith.constant 0 : index
    %106 = memref.load %arg7[%c0_61] : memref<1xf32, #tpu.memory_space<smem>>
    %107 = vector.broadcast %106 : f32 to vector<8x8xf32>
    %108 = arith.addf %105, %107 : vector<8x8xf32>
    %c0_62 = arith.constant 0 : index
    %c0_63 = arith.constant 0 : index
    %109 = vector.load %arg8[%c0_62, %c0_63] : memref<8x8xf32, #tpu.memory_space<vmem>>, vector<8x8xf32>
    tpu.vector_store %arg8[%c0_62, %c0_63], %108 {strides = array<i32>} : memref<8x8xf32, #tpu.memory_space<vmem>>, vector<8x8xf32>,
    return
  }
  func.func @transform_0(%arg0: i32, %arg1: i32) -> (i32, i32) {
    %c0_i32 = arith.constant 0 : i32
    return %arg0, %arg1 : i32, i32
  }
  func.func @transform_1(%arg0: i32, %arg1: i32) -> (i32, i32) {
    %c0_i32 = arith.constant 0 : i32
    %c0_i32_0 = arith.constant 0 : i32
    %c0_i32_1 = arith.constant 0 : i32
    return %c0_i32, %c0_i32_0 : i32, i32
  }
  func.func @transform_2(%arg0: i32, %arg1: i32) -> (i32, i32) {
    %c0_i32 = arith.constant 0 : i32
    %c0_i32_0 = arith.constant 0 : i32
    %c0_i32_1 = arith.constant 0 : i32
    return %c0_i32, %c0_i32_0 : i32, i32
  }
  func.func @transform_3(%arg0: i32, %arg1: i32) -> (i32, i32) {
    %c0_i32 = arith.constant 0 : i32
    %c0_i32_0 = arith.constant 0 : i32
    %c0_i32_1 = arith.constant 0 : i32
    return %c0_i32, %c0_i32_0 : i32, i32
  }
  func.func @transform_4(%arg0: i32, %arg1: i32) -> (i32, i32) {
    %c0_i32 = arith.constant 0 : i32
    %c0_i32_0 = arith.constant 0 : i32
    %c0_i32_1 = arith.constant 0 : i32
    return %c0_i32, %c0_i32_0 : i32, i32
  }
  func.func @transform_5(%arg0: i32, %arg1: i32) -> i32 {
    %c0_i32 = arith.constant 0 : i32
    %c0_i32_0 = arith.constant 0 : i32
    return %c0_i32 : i32
  }
  func.func @transform_6(%arg0: i32, %arg1: i32) -> (i32, i32) {
    %c0_i32 = arith.constant 0 : i32
    return %arg0, %arg1 : i32, i32
  }
}

</mosaic_0001>

<llo_original>
// kernel: rnn_forward.1
$region0: #{rnn_forward.1}
  #allocation0 [shape = 'u32[]', space=smem, size = 0x4, offset = 0x4, fixed_abs, tag = 'smem constant byte address 0x4 - core index']
  #allocation1 [shape = 'u32[144,128]{1,0:T(1,128)}', space=vmem, size = 0x12000, scoped, tag = 'internal scratch']
  #allocation2 [shape = 'f32[8,128]{1,0:T(8,128)}', space=vmem, size = 0x1000, scoped, tag = 'scratch operand']
  #allocation3 [shape = 'f32[8,8,128]{2,1,0:T(8,128)}', space=vmem, size = 0x8000, scoped, tag = 'scratch operand']
  #allocation4 [shape = 'f32[1]{0:T(128)S(6)}', space=smem, size = 0x200, scoped, tag = 'scoped memory for rnn_forward.1']
  %s0 = inlined_call_operand.vmem [shape: f32[8,8], index: 0, kind: input, shape index: {}]
  %s1 = inlined_call_operand.vmem [shape: f32[1,128], index: 1, kind: input, shape index: {}]
  %s2 = inlined_call_operand.vmem [shape: f32[128,128], index: 2, kind: input, shape index: {}]
  %s3 = inlined_call_operand.vmem [shape: f32[1,128], index: 3, kind: input, shape index: {}]
  %s4 = inlined_call_operand.vmem [shape: f32[1,128], index: 4, kind: input, shape index: {}]
  %s5 = inlined_call_operand.<no memory space> [shape: f32[1], index: 5, kind: input, shape index: {}]
  %s6 = inlined_call_operand.vmem [shape: f32[8,8], index: 6, kind: output, shape index: {}]
  %s7 = sld [smem:[#allocation0]]
  $region38: #{rnn_forward.1} parent=0
    _
  %s9 = ssub.s32 1, %s7
  %s10 = scalar_select 0, %s9, %s7
  %11 = sst [smem:[#allocation4]] %s5
  // Predicated region
  $region2: #{rnn_forward.1} parent=0 // pred_check
    _
  $region3: #{rnn_forward.1} parent=0 // pred_check_branch
    %13 = sbr.rel (0) target = $region5
  $region4: #{rnn_forward.1} parent=0 // pred_region
    _
  $region5: #{rnn_forward.1} parent=0 // pred_fallthru
    _
  // Predicated region
  $region6: #{rnn_forward.1} parent=0 // pred_check
    _
  $region7: #{rnn_forward.1} parent=0 // pred_check_branch
    %15 = sbr.rel (0) target = $region9
  $region8: #{rnn_forward.1} parent=0 // pred_region
    _
  $region9: #{rnn_forward.1} parent=0 // pred_fallthru
    _
  // Predicated region
  $region10: #{rnn_forward.1} parent=0 // pred_check
    _
  $region11: #{rnn_forward.1} parent=0 // pred_check_branch
    %17 = sbr.rel (0) target = $region13
  $region12: #{rnn_forward.1} parent=0 // pred_region
    _
  $region13: #{rnn_forward.1} parent=0 // pred_fallthru
    _
  // Predicated region
  $region14: #{rnn_forward.1} parent=0 // pred_check
    _
  $region15: #{rnn_forward.1} parent=0 // pred_check_branch
    %19 = sbr.rel (0) target = $region17
  $region16: #{rnn_forward.1} parent=0 // pred_region
    _
  $region17: #{rnn_forward.1} parent=0 // pred_fallthru
    _
  // Predicated region
  $region18: #{rnn_forward.1} parent=0 // pred_check
    _
  $region19: #{rnn_forward.1} parent=0 // pred_check_branch
    %21 = sbr.rel (0) target = $region21
  $region20: #{rnn_forward.1} parent=0 // pred_region
    _
  $region21: #{rnn_forward.1} parent=0 // pred_fallthru
    _
  // Predicated region
  $region22: #{rnn_forward.1} parent=0 // pred_check
    _
  $region23: #{rnn_forward.1} parent=0 // pred_check_branch
    %23 = sbr.rel (0) target = $region25
  $region24: #{rnn_forward.1} parent=0 // pred_region
    _
  $region25: #{rnn_forward.1} parent=0 // pred_fallthru
    _
  %p24 = scmp.eq.s32.totalorder 0, 0
  // Predicated region
  $region26: #{rnn_forward.1} parent=0 // pred_check
    %p25 = pneg %p24
  $region27: #{rnn_forward.1} parent=0 // pred_check_branch
    %27 = sbr.rel (%p25) target = $region29
  $region28: #{rnn_forward.1} parent=0 // pred_region
    %28 = vst [vmem:[#allocation2] sm:$0xff] 0.0
  $region29: #{rnn_forward.1} parent=0 // pred_fallthru
    _
  %v29 = vld [vmem:[%s0] sm:$0xff]
  %30 = vxpose.xlu0.b32.start [1/16] %v29, 128
  %31 = vxpose.xlu0.b32.cont [2/16] 0.0, 128
  %32 = vxpose.xlu0.b32.cont [3/16] 0.0, 128
  %33 = vxpose.xlu0.b32.cont [4/16] 0.0, 128
  %34 = vxpose.xlu0.b32.cont [5/16] 0.0, 128
  %35 = vxpose.xlu0.b32.cont [6/16] 0.0, 128
  %36 = vxpose.xlu0.b32.cont [7/16] 0.0, 128
  %37 = vxpose.xlu0.b32.cont [8/16] 0.0, 128
  %38 = vxpose.xlu0.b32.cont [9/16] 0.0, 128
  %39 = vxpose.xlu0.b32.cont [10/16] 0.0, 128
  %40 = vxpose.xlu0.b32.cont [11/16] 0.0, 128
  %41 = vxpose.xlu0.b32.cont [12/16] 0.0, 128
  %42 = vxpose.xlu0.b32.cont [13/16] 0.0, 128
  %43 = vxpose.xlu0.b32.cont [14/16] 0.0, 128
  %44 = vxpose.xlu0.b32.cont [15/16] 0.0, 128
  %45 = vxpose.xlu0.b32.end [16/16] 0.0, 128
  %v46 = vpop.trf.xlu0
  %v47 = vpop.trf.xlu0
  %v48 = vpop.trf.xlu0
  %v49 = vpop.trf.xlu0
  %v50 = vpop.trf.xlu0
  %v51 = vpop.trf.xlu0
  %v52 = vpop.trf.xlu0
  %v53 = vpop.trf.xlu0
  %v54 = vpop.trf.xlu0
  %v55 = vpop.trf.xlu0
  %v56 = vpop.trf.xlu0
  %v57 = vpop.trf.xlu0
  %v58 = vpop.trf.xlu0
  %v59 = vpop.trf.xlu0
  %v60 = vpop.trf.xlu0
  %v61 = vpop.trf.xlu0
  %v62 = vlaneseq
  %v63 = vshrl.u32 %v62, 7
  %v64 = vsub.s32 0, %v63
  %v65 = vrot.slane %v46, %v64
  %67 = vbcast.lane.b32.xlu0 %v65, 256
  %v68 = vpop.permute.xlu0 %67
  %v69 = vlaneseq
  %v70 = vshrl.u32 %v69, 7
  %v71 = vsub.s32 1, %v70
  %v72 = vrot.slane %v46, %v71
  %74 = vbcast.lane.b32.xlu0 %v72, 256
  %v75 = vpop.permute.xlu0 %74
  %v76 = vlaneseq
  %v77 = vshrl.u32 %v76, 7
  %v78 = vsub.s32 2, %v77
  %v79 = vrot.slane %v46, %v78
  %81 = vbcast.lane.b32.xlu0 %v79, 256
  %v82 = vpop.permute.xlu0 %81
  %v83 = vlaneseq
  %v84 = vshrl.u32 %v83, 7
  %v85 = vsub.s32 3, %v84
  %v86 = vrot.slane %v46, %v85
  %88 = vbcast.lane.b32.xlu0 %v86, 256
  %v89 = vpop.permute.xlu0 %88
  %v90 = vlaneseq
  %v91 = vshrl.u32 %v90, 7
  %v92 = vsub.s32 4, %v91
  %v93 = vrot.slane %v46, %v92
  %95 = vbcast.lane.b32.xlu0 %v93, 256
  %v96 = vpop.permute.xlu0 %95
  %v97 = vlaneseq
  %v98 = vshrl.u32 %v97, 7
  %v99 = vsub.s32 5, %v98
  %v100 = vrot.slane %v46, %v99
  %102 = vbcast.lane.b32.xlu0 %v100, 256
  %v103 = vpop.permute.xlu0 %102
  %v104 = vlaneseq
  %v105 = vshrl.u32 %v104, 7
  %v106 = vsub.s32 6, %v105
  %v107 = vrot.slane %v46, %v106
  %109 = vbcast.lane.b32.xlu0 %v107, 256
  %v110 = vpop.permute.xlu0 %109
  %v111 = vlaneseq
  %v112 = vshrl.u32 %v111, 7
  %v113 = vsub.s32 7, %v112
  %v114 = vrot.slane %v46, %v113
  %116 = vbcast.lane.b32.xlu0 %v114, 256
  %v117 = vpop.permute.xlu0 %116
  %v118 = vld [vmem:[%s1] sm:$0x1]
  %v120 = vlaneseq
  %v121 = vshrl.u32 %v120, 7
  %v122 = vsub.s32 0, %v121
  %v123 = vrot.slane %v118, %v122
  %v125 = vmul.f32 %v68, %v123
  %v126 = vmul.f32 %v75, %v123
  %v127 = vmul.f32 %v82, %v123
  %v128 = vmul.f32 %v89, %v123
  %v129 = vmul.f32 %v96, %v123
  %v130 = vmul.f32 %v103, %v123
  %v131 = vmul.f32 %v110, %v123
  %v132 = vmul.f32 %v117, %v123
  %v133 = vld [vmem:[%s3] sm:$0x1]
  %v135 = vlaneseq
  %v136 = vshrl.u32 %v135, 7
  %v137 = vsub.s32 0, %v136
  %v138 = vrot.slane %v133, %v137
  %v140 = vadd.f32 %v125, %v138
  %v141 = vadd.f32 %v126, %v138
  %v142 = vadd.f32 %v127, %v138
  %v143 = vadd.f32 %v128, %v138
  %v144 = vadd.f32 %v129, %v138
  %v145 = vadd.f32 %v130, %v138
  %v146 = vadd.f32 %v131, %v138
  %v147 = vadd.f32 %v132, %v138
  %148 = vst [vmem:[#allocation3] sm:$0xff] %v140
  %149 = vst [vmem:[#allocation3 + $0x8] sm:$0xff] %v141
  %150 = vst [vmem:[#allocation3 + $0x10] sm:$0xff] %v142
  %151 = vst [vmem:[#allocation3 + $0x18] sm:$0xff] %v143
  %152 = vst [vmem:[#allocation3 + $0x20] sm:$0xff] %v144
  %153 = vst [vmem:[#allocation3 + $0x28] sm:$0xff] %v145
  %154 = vst [vmem:[#allocation3 + $0x30] sm:$0xff] %v146
  %155 = vst [vmem:[#allocation3 + $0x38] sm:$0xff] %v147
  %v156 = vld [vmem:[%s2] sm:$0xff]
  %v157 = vld [vmem:[%s2 + $0x8] sm:$0xff]
  %v158 = vld [vmem:[%s2 + $0x10] sm:$0xff]
  %v159 = vld [vmem:[%s2 + $0x18] sm:$0xff]
  %v160 = vld [vmem:[%s2 + $0x20] sm:$0xff]
  %v161 = vld [vmem:[%s2 + $0x28] sm:$0xff]
  %v162 = vld [vmem:[%s2 + $0x30] sm:$0xff]
  %v163 = vld [vmem:[%s2 + $0x38] sm:$0xff]
  %v164 = vld [vmem:[%s2 + $0x40] sm:$0xff]
  %v165 = vld [vmem:[%s2 + $0x48] sm:$0xff]
  %v166 = vld [vmem:[%s2 + $0x50] sm:$0xff]
  %v167 = vld [vmem:[%s2 + $0x58] sm:$0xff]
  %v168 = vld [vmem:[%s2 + $0x60] sm:$0xff]
  %v169 = vld [vmem:[%s2 + $0x68] sm:$0xff]
  %v170 = vld [vmem:[%s2 + $0x70] sm:$0xff]
  %v171 = vld [vmem:[%s2 + $0x78] sm:$0xff]
  %v172 = vld [vmem:[#allocation2] sm:$0xff]
  %v173 = vld [vmem:[#allocation3] sm:$0xff]
  %174 = vmatprep.subr.mxu0 0.0
  %175 = vmatpush1.msra.mxu0 %v171
  %176 = vmatprep.subr.mxu0 0.0
  %177 = vmatpush1.msra.mxu0 %v170
  %178 = vmatprep.subr.mxu0 0.0
  %179 = vmatpush1.msra.mxu0 %v169
  %180 = vmatprep.subr.mxu0 0.0
  %181 = vmatpush1.msra.mxu0 %v168
  %182 = vmatprep.subr.mxu0 0.0
  %183 = vmatpush1.msra.mxu0 %v167
  %184 = vmatprep.subr.mxu0 0.0
  %185 = vmatpush1.msra.mxu0 %v166
  %186 = vmatprep.subr.mxu0 0.0
  %187 = vmatpush1.msra.mxu0 %v165
  %188 = vmatprep.subr.mxu0 0.0
  %189 = vmatpush1.msra.mxu0 %v164
  %190 = vmatprep.subr.mxu0 0.0
  %191 = vmatpush1.msra.mxu0 %v163
  %192 = vmatprep.subr.mxu0 0.0
  %193 = vmatpush1.msra.mxu0 %v162
  %194 = vmatprep.subr.mxu0 0.0
  %195 = vmatpush1.msra.mxu0 %v161
  %196 = vmatprep.subr.mxu0 0.0
  %197 = vmatpush1.msra.mxu0 %v160
  %198 = vmatprep.subr.mxu0 0.0
  %199 = vmatpush1.msra.mxu0 %v159
  %200 = vmatprep.subr.mxu0 0.0
  %201 = vmatpush1.msra.mxu0 %v158
  %202 = vmatprep.subr.mxu0 0.0
  %203 = vmatpush1.msra.mxu0 %v157
  %204 = vmatprep.subr.mxu0 0.0
  %205 = vmatpush1.msra.mxu0 %v156
  %206 = vmatprep.subr.mxu0 0.0
  %207 = vmatpush2.msra.mxu0 0.0
  %208 = vmatprep.subr.mxu0 0.0
  %209 = vmatpush2.msra.mxu0 0.0
  %210 = vmatprep.subr.mxu0 0.0
  %211 = vmatpush2.msra.mxu0 0.0
  %212 = vmatprep.subr.mxu0 0.0
  %213 = vmatpush2.msra.mxu0 0.0
  %214 = vmatprep.subr.mxu0 0.0
  %215 = vmatpush2.msra.mxu0 0.0
  %216 = vmatprep.subr.mxu0 0.0
  %217 = vmatpush2.msra.mxu0 0.0
  %218 = vmatprep.subr.mxu0 0.0
  %219 = vmatpush2.msra.mxu0 0.0
  %220 = vmatprep.subr.mxu0 0.0
  %221 = vmatpush2.msra.mxu0 0.0
  %222 = vmatprep.subr.mxu0 0.0
  %223 = vmatpush2.msra.mxu0 0.0
  %224 = vmatprep.subr.mxu0 0.0
  %225 = vmatpush2.msra.mxu0 0.0
  %226 = vmatprep.subr.mxu0 0.0
  %227 = vmatpush2.msra.mxu0 0.0
  %228 = vmatprep.subr.mxu0 0.0
  %229 = vmatpush2.msra.mxu0 0.0
  %230 = vmatprep.subr.mxu0 0.0
  %231 = vmatpush2.msra.mxu0 0.0
  %232 = vmatprep.subr.mxu0 0.0
  %233 = vmatpush2.msra.mxu0 0.0
  %234 = vmatprep.subr.mxu0 0.0
  %235 = vmatpush2.msra.mxu0 0.0
  %236 = vmatprep.subr.mxu0 0.0
  %237 = vmatpush2.msra.mxu0 0.0
  %238 = vmatprep.mubr.f32.mxu0 0.0
  %239 = vmatmul.mubr.f32.gmra.mxu0 %v172
  %v240 = vpop.f32.mrf.mxu0
  %v241 = vadd.f32 0.0, %v240
  %v242 = vpop.f32.mrf.mxu0
  %243 = vdwg.mxu0
  %v244 = vadd.f32 %v173, %v241
  %v245 = vtanh.pop %v244
  %246 = vst [vmem:[#allocation3] sm:$0xff] %v245
  %s247 = scalar_lea.vmem [#allocation3], 8
  %v248 = vld [vmem:[%s247] sm:$0xff]
  %249 = vmatprep.subr.mxu0 0.0
  %250 = vmatpush1.msra.mxu0 %v171
  %251 = vmatprep.subr.mxu0 0.0
  %252 = vmatpush1.msra.mxu0 %v170
  %253 = vmatprep.subr.mxu0 0.0
  %254 = vmatpush1.msra.mxu0 %v169
  %255 = vmatprep.subr.mxu0 0.0
  %256 = vmatpush1.msra.mxu0 %v168
  %257 = vmatprep.subr.mxu0 0.0
  %258 = vmatpush1.msra.mxu0 %v167
  %259 = vmatprep.subr.mxu0 0.0
  %260 = vmatpush1.msra.mxu0 %v166
  %261 = vmatprep.subr.mxu0 0.0
  %262 = vmatpush1.msra.mxu0 %v165
  %263 = vmatprep.subr.mxu0 0.0
  %264 = vmatpush1.msra.mxu0 %v164
  %265 = vmatprep.subr.mxu0 0.0
  %266 = vmatpush1.msra.mxu0 %v163
  %267 = vmatprep.subr.mxu0 0.0
  %268 = vmatpush1.msra.mxu0 %v162
  %269 = vmatprep.subr.mxu0 0.0
  %270 = vmatpush1.msra.mxu0 %v161
  %271 = vmatprep.subr.mxu0 0.0
  %272 = vmatpush1.msra.mxu0 %v160
  %273 = vmatprep.subr.mxu0 0.0
  %274 = vmatpush1.msra.mxu0 %v159
  %275 = vmatprep.subr.mxu0 0.0
  %276 = vmatpush1.msra.mxu0 %v158
  %277 = vmatprep.subr.mxu0 0.0
  %278 = vmatpush1.msra.mxu0 %v157
  %279 = vmatprep.subr.mxu0 0.0
  %280 = vmatpush1.msra.mxu0 %v156
  %281 = vmatprep.subr.mxu0 0.0
  %282 = vmatpush2.msra.mxu0 0.0
  %283 = vmatprep.subr.mxu0 0.0
  %284 = vmatpush2.msra.mxu0 0.0
  %285 = vmatprep.subr.mxu0 0.0
  %286 = vmatpush2.msra.mxu0 0.0
  %287 = vmatprep.subr.mxu0 0.0
  %288 = vmatpush2.msra.mxu0 0.0
  %289 = vmatprep.subr.mxu0 0.0
  %290 = vmatpush2.msra.mxu0 0.0
  %291 = vmatprep.subr.mxu0 0.0
  %292 = vmatpush2.msra.mxu0 0.0
  %293 = vmatprep.subr.mxu0 0.0
  %294 = vmatpush2.msra.mxu0 0.0
  %295 = vmatprep.subr.mxu0 0.0
  %296 = vmatpush2.msra.mxu0 0.0
  %297 = vmatprep.subr.mxu0 0.0
  %298 = vmatpush2.msra.mxu0 0.0
  %299 = vmatprep.subr.mxu0 0.0
  %300 = vmatpush2.msra.mxu0 0.0
  %301 = vmatprep.subr.mxu0 0.0
  %302 = vmatpush2.msra.mxu0 0.0
  %303 = vmatprep.subr.mxu0 0.0
  %304 = vmatpush2.msra.mxu0 0.0
  %305 = vmatprep.subr.mxu0 0.0
  %306 = vmatpush2.msra.mxu0 0.0
  %307 = vmatprep.subr.mxu0 0.0
  %308 = vmatpush2.msra.mxu0 0.0
  %309 = vmatprep.subr.mxu0 0.0
  %310 = vmatpush2.msra.mxu0 0.0
  %311 = vmatprep.subr.mxu0 0.0
  %312 = vmatpush2.msra.mxu0 0.0
  %313 = vmatprep.mubr.f32.mxu0 0.0
  %314 = vmatmul.mubr.f32.gmra.mxu0 %v245
  %v315 = vpop.f32.mrf.mxu0
  %v316 = vadd.f32 0.0, %v315
  %v317 = vpop.f32.mrf.mxu0
  %318 = vdwg.mxu0
  %v319 = vadd.f32 %v248, %v316
  %v320 = vtanh.pop %v319
  %321 = vst [vmem:[%s247] sm:$0xff] %v320
  %s322 = scalar_lea.vmem [#allocation3], 16
  %v323 = vld [vmem:[%s322] sm:$0xff]
  %324 = vmatprep.subr.mxu0 0.0
  %325 = vmatpush1.msra.mxu0 %v171
  %326 = vmatprep.subr.mxu0 0.0
  %327 = vmatpush1.msra.mxu0 %v170
  %328 = vmatprep.subr.mxu0 0.0
  %329 = vmatpush1.msra.mxu0 %v169
  %330 = vmatprep.subr.mxu0 0.0
  %331 = vmatpush1.msra.mxu0 %v168
  %332 = vmatprep.subr.mxu0 0.0
  %333 = vmatpush1.msra.mxu0 %v167
  %334 = vmatprep.subr.mxu0 0.0
  %335 = vmatpush1.msra.mxu0 %v166
  %336 = vmatprep.subr.mxu0 0.0
  %337 = vmatpush1.msra.mxu0 %v165
  %338 = vmatprep.subr.mxu0 0.0
  %339 = vmatpush1.msra.mxu0 %v164
  %340 = vmatprep.subr.mxu0 0.0
  %341 = vmatpush1.msra.mxu0 %v163
  %342 = vmatprep.subr.mxu0 0.0
  %343 = vmatpush1.msra.mxu0 %v162
  %344 = vmatprep.subr.mxu0 0.0
  %345 = vmatpush1.msra.mxu0 %v161
  %346 = vmatprep.subr.mxu0 0.0
  %347 = vmatpush1.msra.mxu0 %v160
  %348 = vmatprep.subr.mxu0 0.0
  %349 = vmatpush1.msra.mxu0 %v159
  %350 = vmatprep.subr.mxu0 0.0
  %351 = vmatpush1.msra.mxu0 %v158
  %352 = vmatprep.subr.mxu0 0.0
  %353 = vmatpush1.msra.mxu0 %v157
  %354 = vmatprep.subr.mxu0 0.0
  %355 = vmatpush1.msra.mxu0 %v156
  %356 = vmatprep.subr.mxu0 0.0
  %357 = vmatpush2.msra.mxu0 0.0
  %358 = vmatprep.subr.mxu0 0.0
  %359 = vmatpush2.msra.mxu0 0.0
  %360 = vmatprep.subr.mxu0 0.0
  %361 = vmatpush2.msra.mxu0 0.0
  %362 = vmatprep.subr.mxu0 0.0
  %363 = vmatpush2.msra.mxu0 0.0
  %364 = vmatprep.subr.mxu0 0.0
  %365 = vmatpush2.msra.mxu0 0.0
  %366 = vmatprep.subr.mxu0 0.0
  %367 = vmatpush2.msra.mxu0 0.0
  %368 = vmatprep.subr.mxu0 0.0
  %369 = vmatpush2.msra.mxu0 0.0
  %370 = vmatprep.subr.mxu0 0.0
  %371 = vmatpush2.msra.mxu0 0.0
  %372 = vmatprep.subr.mxu0 0.0
  %373 = vmatpush2.msra.mxu0 0.0
  %374 = vmatprep.subr.mxu0 0.0
  %375 = vmatpush2.msra.mxu0 0.0
  %376 = vmatprep.subr.mxu0 0.0
  %377 = vmatpush2.msra.mxu0 0.0
  %378 = vmatprep.subr.mxu0 0.0
  %379 = vmatpush2.msra.mxu0 0.0
  %380 = vmatprep.subr.mxu0 0.0
  %381 = vmatpush2.msra.mxu0 0.0
  %382 = vmatprep.subr.mxu0 0.0
  %383 = vmatpush2.msra.mxu0 0.0
  %384 = vmatprep.subr.mxu0 0.0
  %385 = vmatpush2.msra.mxu0 0.0
  %386 = vmatprep.subr.mxu0 0.0
  %387 = vmatpush2.msra.mxu0 0.0
  %388 = vmatprep.mubr.f32.mxu0 0.0
  %389 = vmatmul.mubr.f32.gmra.mxu0 %v320
  %v390 = vpop.f32.mrf.mxu0
  %v391 = vadd.f32 0.0, %v390
  %v392 = vpop.f32.mrf.mxu0
  %393 = vdwg.mxu0
  %v394 = vadd.f32 %v323, %v391
  %v395 = vtanh.pop %v394
  %396 = vst [vmem:[%s322] sm:$0xff] %v395
  %s397 = scalar_lea.vmem [#allocation3], 24
  %v398 = vld [vmem:[%s397] sm:$0xff]
  %399 = vmatprep.subr.mxu0 0.0
  %400 = vmatpush1.msra.mxu0 %v171
  %401 = vmatprep.subr.mxu0 0.0
  %402 = vmatpush1.msra.mxu0 %v170
  %403 = vmatprep.subr.mxu0 0.0
  %404 = vmatpush1.msra.mxu0 %v169
  %405 = vmatprep.subr.mxu0 0.0
  %406 = vmatpush1.msra.mxu0 %v168
  %407 = vmatprep.subr.mxu0 0.0
  %408 = vmatpush1.msra.mxu0 %v167
  %409 = vmatprep.subr.mxu0 0.0
  %410 = vmatpush1.msra.mxu0 %v166
  %411 = vmatprep.subr.mxu0 0.0
  %412 = vmatpush1.msra.mxu0 %v165
  %413 = vmatprep.subr.mxu0 0.0
  %414 = vmatpush1.msra.mxu0 %v164
  %415 = vmatprep.subr.mxu0 0.0
  %416 = vmatpush1.msra.mxu0 %v163
  %417 = vmatprep.subr.mxu0 0.0
  %418 = vmatpush1.msra.mxu0 %v162
  %419 = vmatprep.subr.mxu0 0.0
  %420 = vmatpush1.msra.mxu0 %v161
  %421 = vmatprep.subr.mxu0 0.0
  %422 = vmatpush1.msra.mxu0 %v160
  %423 = vmatprep.subr.mxu0 0.0
  %424 = vmatpush1.msra.mxu0 %v159
  %425 = vmatprep.subr.mxu0 0.0
  %426 = vmatpush1.msra.mxu0 %v158
  %427 = vmatprep.subr.mxu0 0.0
  %428 = vmatpush1.msra.mxu0 %v157
  %429 = vmatprep.subr.mxu0 0.0
  %430 = vmatpush1.msra.mxu0 %v156
  %431 = vmatprep.subr.mxu0 0.0
  %432 = vmatpush2.msra.mxu0 0.0
  %433 = vmatprep.subr.mxu0 0.0
  %434 = vmatpush2.msra.mxu0 0.0
  %435 = vmatprep.subr.mxu0 0.0
  %436 = vmatpush2.msra.mxu0 0.0
  %437 = vmatprep.subr.mxu0 0.0
  %438 = vmatpush2.msra.mxu0 0.0
  %439 = vmatprep.subr.mxu0 0.0
  %440 = vmatpush2.msra.mxu0 0.0
  %441 = vmatprep.subr.mxu0 0.0
  %442 = vmatpush2.msra.mxu0 0.0
  %443 = vmatprep.subr.mxu0 0.0
  %444 = vmatpush2.msra.mxu0 0.0
  %445 = vmatprep.subr.mxu0 0.0
  %446 = vmatpush2.msra.mxu0 0.0
  %447 = vmatprep.subr.mxu0 0.0
  %448 = vmatpush2.msra.mxu0 0.0
  %449 = vmatprep.subr.mxu0 0.0
  %450 = vmatpush2.msra.mxu0 0.0
  %451 = vmatprep.subr.mxu0 0.0
  %452 = vmatpush2.msra.mxu0 0.0
  %453 = vmatprep.subr.mxu0 0.0
  %454 = vmatpush2.msra.mxu0 0.0
  %455 = vmatprep.subr.mxu0 0.0
  %456 = vmatpush2.msra.mxu0 0.0
  %457 = vmatprep.subr.mxu0 0.0
  %458 = vmatpush2.msra.mxu0 0.0
  %459 = vmatprep.subr.mxu0 0.0
  %460 = vmatpush2.msra.mxu0 0.0
  %461 = vmatprep.subr.mxu0 0.0
  %462 = vmatpush2.msra.mxu0 0.0
  %463 = vmatprep.mubr.f32.mxu0 0.0
  %464 = vmatmul.mubr.f32.gmra.mxu0 %v395
  %v465 = vpop.f32.mrf.mxu0
  %v466 = vadd.f32 0.0, %v465
  %v467 = vpop.f32.mrf.mxu0
  %468 = vdwg.mxu0
  %v469 = vadd.f32 %v398, %v466
  %v470 = vtanh.pop %v469
  %471 = vst [vmem:[%s397] sm:$0xff] %v470
  %s472 = scalar_lea.vmem [#allocation3], 32
  %v473 = vld [vmem:[%s472] sm:$0xff]
  %474 = vmatprep.subr.mxu0 0.0
  %475 = vmatpush1.msra.mxu0 %v171
  %476 = vmatprep.subr.mxu0 0.0
  %477 = vmatpush1.msra.mxu0 %v170
  %478 = vmatprep.subr.mxu0 0.0
  %479 = vmatpush1.msra.mxu0 %v169
  %480 = vmatprep.subr.mxu0 0.0
  %481 = vmatpush1.msra.mxu0 %v168
  %482 = vmatprep.subr.mxu0 0.0
  %483 = vmatpush1.msra.mxu0 %v167
  %484 = vmatprep.subr.mxu0 0.0
  %485 = vmatpush1.msra.mxu0 %v166
  %486 = vmatprep.subr.mxu0 0.0
  %487 = vmatpush1.msra.mxu0 %v165
  %488 = vmatprep.subr.mxu0 0.0
  %489 = vmatpush1.msra.mxu0 %v164
  %490 = vmatprep.subr.mxu0 0.0
  %491 = vmatpush1.msra.mxu0 %v163
  %492 = vmatprep.subr.mxu0 0.0
  %493 = vmatpush1.msra.mxu0 %v162
  %494 = vmatprep.subr.mxu0 0.0
  %495 = vmatpush1.msra.mxu0 %v161
  %496 = vmatprep.subr.mxu0 0.0
  %497 = vmatpush1.msra.mxu0 %v160
  %498 = vmatprep.subr.mxu0 0.0
  %499 = vmatpush1.msra.mxu0 %v159
  %500 = vmatprep.subr.mxu0 0.0
  %501 = vmatpush1.msra.mxu0 %v158
  %502 = vmatprep.subr.mxu0 0.0
  %503 = vmatpush1.msra.mxu0 %v157
  %504 = vmatprep.subr.mxu0 0.0
  %505 = vmatpush1.msra.mxu0 %v156
  %506 = vmatprep.subr.mxu0 0.0
  %507 = vmatpush2.msra.mxu0 0.0
  %508 = vmatprep.subr.mxu0 0.0
  %509 = vmatpush2.msra.mxu0 0.0
  %510 = vmatprep.subr.mxu0 0.0
  %511 = vmatpush2.msra.mxu0 0.0
  %512 = vmatprep.subr.mxu0 0.0
  %513 = vmatpush2.msra.mxu0 0.0
  %514 = vmatprep.subr.mxu0 0.0
  %515 = vmatpush2.msra.mxu0 0.0
  %516 = vmatprep.subr.mxu0 0.0
  %517 = vmatpush2.msra.mxu0 0.0
  %518 = vmatprep.subr.mxu0 0.0
  %519 = vmatpush2.msra.mxu0 0.0
  %520 = vmatprep.subr.mxu0 0.0
  %521 = vmatpush2.msra.mxu0 0.0
  %522 = vmatprep.subr.mxu0 0.0
  %523 = vmatpush2.msra.mxu0 0.0
  %524 = vmatprep.subr.mxu0 0.0
  %525 = vmatpush2.msra.mxu0 0.0
  %526 = vmatprep.subr.mxu0 0.0
  %527 = vmatpush2.msra.mxu0 0.0
  %528 = vmatprep.subr.mxu0 0.0
  %529 = vmatpush2.msra.mxu0 0.0
  %530 = vmatprep.subr.mxu0 0.0
  %531 = vmatpush2.msra.mxu0 0.0
  %532 = vmatprep.subr.mxu0 0.0
  %533 = vmatpush2.msra.mxu0 0.0
  %534 = vmatprep.subr.mxu0 0.0
  %535 = vmatpush2.msra.mxu0 0.0
  %536 = vmatprep.subr.mxu0 0.0
  %537 = vmatpush2.msra.mxu0 0.0
  %538 = vmatprep.mubr.f32.mxu0 0.0
  %539 = vmatmul.mubr.f32.gmra.mxu0 %v470
  %v540 = vpop.f32.mrf.mxu0
  %v541 = vadd.f32 0.0, %v540
  %v542 = vpop.f32.mrf.mxu0
  %543 = vdwg.mxu0
  %v544 = vadd.f32 %v473, %v541
  %v545 = vtanh.pop %v544
  %546 = vst [vmem:[%s472] sm:$0xff] %v545
  %s547 = scalar_lea.vmem [#allocation3], 40
  %v548 = vld [vmem:[%s547] sm:$0xff]
  %549 = vmatprep.subr.mxu0 0.0
  %550 = vmatpush1.msra.mxu0 %v171
  %551 = vmatprep.subr.mxu0 0.0
  %552 = vmatpush1.msra.mxu0 %v170
  %553 = vmatprep.subr.mxu0 0.0
  %554 = vmatpush1.msra.mxu0 %v169
  %555 = vmatprep.subr.mxu0 0.0
  %556 = vmatpush1.msra.mxu0 %v168
  %557 = vmatprep.subr.mxu0 0.0
  %558 = vmatpush1.msra.mxu0 %v167
  %559 = vmatprep.subr.mxu0 0.0
  %560 = vmatpush1.msra.mxu0 %v166
  %561 = vmatprep.subr.mxu0 0.0
  %562 = vmatpush1.msra.mxu0 %v165
  %563 = vmatprep.subr.mxu0 0.0
  %564 = vmatpush1.msra.mxu0 %v164
  %565 = vmatprep.subr.mxu0 0.0
  %566 = vmatpush1.msra.mxu0 %v163
  %567 = vmatprep.subr.mxu0 0.0
  %568 = vmatpush1.msra.mxu0 %v162
  %569 = vmatprep.subr.mxu0 0.0
  %570 = vmatpush1.msra.mxu0 %v161
  %571 = vmatprep.subr.mxu0 0.0
  %572 = vmatpush1.msra.mxu0 %v160
  %573 = vmatprep.subr.mxu0 0.0
  %574 = vmatpush1.msra.mxu0 %v159
  %575 = vmatprep.subr.mxu0 0.0
  %576 = vmatpush1.msra.mxu0 %v158
  %577 = vmatprep.subr.mxu0 0.0
  %578 = vmatpush1.msra.mxu0 %v157
  %579 = vmatprep.subr.mxu0 0.0
  %580 = vmatpush1.msra.mxu0 %v156
  %581 = vmatprep.subr.mxu0 0.0
  %582 = vmatpush2.msra.mxu0 0.0
  %583 = vmatprep.subr.mxu0 0.0
  %584 = vmatpush2.msra.mxu0 0.0
  %585 = vmatprep.subr.mxu0 0.0
  %586 = vmatpush2.msra.mxu0 0.0
  %587 = vmatprep.subr.mxu0 0.0
  %588 = vmatpush2.msra.mxu0 0.0
  %589 = vmatprep.subr.mxu0 0.0
  %590 = vmatpush2.msra.mxu0 0.0
  %591 = vmatprep.subr.mxu0 0.0
  %592 = vmatpush2.msra.mxu0 0.0
  %593 = vmatprep.subr.mxu0 0.0
  %594 = vmatpush2.msra.mxu0 0.0
  %595 = vmatprep.subr.mxu0 0.0
  %596 = vmatpush2.msra.mxu0 0.0
  %597 = vmatprep.subr.mxu0 0.0
  %598 = vmatpush2.msra.mxu0 0.0
  %599 = vmatprep.subr.mxu0 0.0
  %600 = vmatpush2.msra.mxu0 0.0
  %601 = vmatprep.subr.mxu0 0.0
  %602 = vmatpush2.msra.mxu0 0.0
  %603 = vmatprep.subr.mxu0 0.0
  %604 = vmatpush2.msra.mxu0 0.0
  %605 = vmatprep.subr.mxu0 0.0
  %606 = vmatpush2.msra.mxu0 0.0
  %607 = vmatprep.subr.mxu0 0.0
  %608 = vmatpush2.msra.mxu0 0.0
  %609 = vmatprep.subr.mxu0 0.0
  %610 = vmatpush2.msra.mxu0 0.0
  %611 = vmatprep.subr.mxu0 0.0
  %612 = vmatpush2.msra.mxu0 0.0
  %613 = vmatprep.mubr.f32.mxu0 0.0
  %614 = vmatmul.mubr.f32.gmra.mxu0 %v545
  %v615 = vpop.f32.mrf.mxu0
  %v616 = vadd.f32 0.0, %v615
  %v617 = vpop.f32.mrf.mxu0
  %618 = vdwg.mxu0
  %v619 = vadd.f32 %v548, %v616
  %v620 = vtanh.pop %v619
  %621 = vst [vmem:[%s547] sm:$0xff] %v620
  %s622 = scalar_lea.vmem [#allocation3], 48
  %v623 = vld [vmem:[%s622] sm:$0xff]
  %624 = vmatprep.subr.mxu0 0.0
  %625 = vmatpush1.msra.mxu0 %v171
  %626 = vmatprep.subr.mxu0 0.0
  %627 = vmatpush1.msra.mxu0 %v170
  %628 = vmatprep.subr.mxu0 0.0
  %629 = vmatpush1.msra.mxu0 %v169
  %630 = vmatprep.subr.mxu0 0.0
  %631 = vmatpush1.msra.mxu0 %v168
  %632 = vmatprep.subr.mxu0 0.0
  %633 = vmatpush1.msra.mxu0 %v167
  %634 = vmatprep.subr.mxu0 0.0
  %635 = vmatpush1.msra.mxu0 %v166
  %636 = vmatprep.subr.mxu0 0.0
  %637 = vmatpush1.msra.mxu0 %v165
  %638 = vmatprep.subr.mxu0 0.0
  %639 = vmatpush1.msra.mxu0 %v164
  %640 = vmatprep.subr.mxu0 0.0
  %641 = vmatpush1.msra.mxu0 %v163
  %642 = vmatprep.subr.mxu0 0.0
  %643 = vmatpush1.msra.mxu0 %v162
  %644 = vmatprep.subr.mxu0 0.0
  %645 = vmatpush1.msra.mxu0 %v161
  %646 = vmatprep.subr.mxu0 0.0
  %647 = vmatpush1.msra.mxu0 %v160
  %648 = vmatprep.subr.mxu0 0.0
  %649 = vmatpush1.msra.mxu0 %v159
  %650 = vmatprep.subr.mxu0 0.0
  %651 = vmatpush1.msra.mxu0 %v158
  %652 = vmatprep.subr.mxu0 0.0
  %653 = vmatpush1.msra.mxu0 %v157
  %654 = vmatprep.subr.mxu0 0.0
  %655 = vmatpush1.msra.mxu0 %v156
  %656 = vmatprep.subr.mxu0 0.0
  %657 = vmatpush2.msra.mxu0 0.0
  %658 = vmatprep.subr.mxu0 0.0
  %659 = vmatpush2.msra.mxu0 0.0
  %660 = vmatprep.subr.mxu0 0.0
  %661 = vmatpush2.msra.mxu0 0.0
  %662 = vmatprep.subr.mxu0 0.0
  %663 = vmatpush2.msra.mxu0 0.0
  %664 = vmatprep.subr.mxu0 0.0
  %665 = vmatpush2.msra.mxu0 0.0
  %666 = vmatprep.subr.mxu0 0.0
  %667 = vmatpush2.msra.mxu0 0.0
  %668 = vmatprep.subr.mxu0 0.0
  %669 = vmatpush2.msra.mxu0 0.0
  %670 = vmatprep.subr.mxu0 0.0
  %671 = vmatpush2.msra.mxu0 0.0
  %672 = vmatprep.subr.mxu0 0.0
  %673 = vmatpush2.msra.mxu0 0.0
  %674 = vmatprep.subr.mxu0 0.0
  %675 = vmatpush2.msra.mxu0 0.0
  %676 = vmatprep.subr.mxu0 0.0
  %677 = vmatpush2.msra.mxu0 0.0
  %678 = vmatprep.subr.mxu0 0.0
  %679 = vmatpush2.msra.mxu0 0.0
  %680 = vmatprep.subr.mxu0 0.0
  %681 = vmatpush2.msra.mxu0 0.0
  %682 = vmatprep.subr.mxu0 0.0
  %683 = vmatpush2.msra.mxu0 0.0
  %684 = vmatprep.subr.mxu0 0.0
  %685 = vmatpush2.msra.mxu0 0.0
  %686 = vmatprep.subr.mxu0 0.0
  %687 = vmatpush2.msra.mxu0 0.0
  %688 = vmatprep.mubr.f32.mxu0 0.0
  %689 = vmatmul.mubr.f32.gmra.mxu0 %v620
  %v690 = vpop.f32.mrf.mxu0
  %v691 = vadd.f32 0.0, %v690
  %v692 = vpop.f32.mrf.mxu0
  %693 = vdwg.mxu0
  %v694 = vadd.f32 %v623, %v691
  %v695 = vtanh.pop %v694
  %696 = vst [vmem:[%s622] sm:$0xff] %v695
  %s697 = scalar_lea.vmem [#allocation3], 56
  %v698 = vld [vmem:[%s697] sm:$0xff]
  %699 = vmatprep.subr.mxu0 0.0
  %700 = vmatpush1.msra.mxu0 %v171
  %701 = vmatprep.subr.mxu0 0.0
  %702 = vmatpush1.msra.mxu0 %v170
  %703 = vmatprep.subr.mxu0 0.0
  %704 = vmatpush1.msra.mxu0 %v169
  %705 = vmatprep.subr.mxu0 0.0
  %706 = vmatpush1.msra.mxu0 %v168
  %707 = vmatprep.subr.mxu0 0.0
  %708 = vmatpush1.msra.mxu0 %v167
  %709 = vmatprep.subr.mxu0 0.0
  %710 = vmatpush1.msra.mxu0 %v166
  %711 = vmatprep.subr.mxu0 0.0
  %712 = vmatpush1.msra.mxu0 %v165
  %713 = vmatprep.subr.mxu0 0.0
  %714 = vmatpush1.msra.mxu0 %v164
  %715 = vmatprep.subr.mxu0 0.0
  %716 = vmatpush1.msra.mxu0 %v163
  %717 = vmatprep.subr.mxu0 0.0
  %718 = vmatpush1.msra.mxu0 %v162
  %719 = vmatprep.subr.mxu0 0.0
  %720 = vmatpush1.msra.mxu0 %v161
  %721 = vmatprep.subr.mxu0 0.0
  %722 = vmatpush1.msra.mxu0 %v160
  %723 = vmatprep.subr.mxu0 0.0
  %724 = vmatpush1.msra.mxu0 %v159
  %725 = vmatprep.subr.mxu0 0.0
  %726 = vmatpush1.msra.mxu0 %v158
  %727 = vmatprep.subr.mxu0 0.0
  %728 = vmatpush1.msra.mxu0 %v157
  %729 = vmatprep.subr.mxu0 0.0
  %730 = vmatpush1.msra.mxu0 %v156
  %731 = vmatprep.subr.mxu0 0.0
  %732 = vmatpush2.msra.mxu0 0.0
  %733 = vmatprep.subr.mxu0 0.0
  %734 = vmatpush2.msra.mxu0 0.0
  %735 = vmatprep.subr.mxu0 0.0
  %736 = vmatpush2.msra.mxu0 0.0
  %737 = vmatprep.subr.mxu0 0.0
  %738 = vmatpush2.msra.mxu0 0.0
  %739 = vmatprep.subr.mxu0 0.0
  %740 = vmatpush2.msra.mxu0 0.0
  %741 = vmatprep.subr.mxu0 0.0
  %742 = vmatpush2.msra.mxu0 0.0
  %743 = vmatprep.subr.mxu0 0.0
  %744 = vmatpush2.msra.mxu0 0.0
  %745 = vmatprep.subr.mxu0 0.0
  %746 = vmatpush2.msra.mxu0 0.0
  %747 = vmatprep.subr.mxu0 0.0
  %748 = vmatpush2.msra.mxu0 0.0
  %749 = vmatprep.subr.mxu0 0.0
  %750 = vmatpush2.msra.mxu0 0.0
  %751 = vmatprep.subr.mxu0 0.0
  %752 = vmatpush2.msra.mxu0 0.0
  %753 = vmatprep.subr.mxu0 0.0
  %754 = vmatpush2.msra.mxu0 0.0
  %755 = vmatprep.subr.mxu0 0.0
  %756 = vmatpush2.msra.mxu0 0.0
  %757 = vmatprep.subr.mxu0 0.0
  %758 = vmatpush2.msra.mxu0 0.0
  %759 = vmatprep.subr.mxu0 0.0
  %760 = vmatpush2.msra.mxu0 0.0
  %761 = vmatprep.subr.mxu0 0.0
  %762 = vmatpush2.msra.mxu0 0.0
  %763 = vmatprep.mubr.f32.mxu0 0.0
  %764 = vmatmul.mubr.f32.gmra.mxu0 %v695
  %v765 = vpop.f32.mrf.mxu0
  %v766 = vadd.f32 0.0, %v765
  %v767 = vpop.f32.mrf.mxu0
  %768 = vdwg.mxu0
  %v769 = vadd.f32 %v698, %v766
  %v770 = vtanh.pop %v769
  %771 = vst [vmem:[%s697] sm:$0xff] %v770
  %772 = vst [vmem:[#allocation2] sm:$0xff] %v770
  %v773 = vld [vmem:[#allocation3] sm:$0xff]
  %v774 = vld [vmem:[#allocation3 + $0x8] sm:$0xff]
  %v775 = vld [vmem:[#allocation3 + $0x10] sm:$0xff]
  %v776 = vld [vmem:[#allocation3 + $0x18] sm:$0xff]
  %v777 = vld [vmem:[#allocation3 + $0x20] sm:$0xff]
  %v778 = vld [vmem:[#allocation3 + $0x28] sm:$0xff]
  %v779 = vld [vmem:[#allocation3 + $0x30] sm:$0xff]
  %v780 = vld [vmem:[#allocation3 + $0x38] sm:$0xff]
  %v781 = vld [vmem:[%s4] sm:$0x1]
  %v783 = vlaneseq
  %v784 = vshrl.u32 %v783, 7
  %v785 = vsub.s32 0, %v784
  %v786 = vrot.slane %v781, %v785
  %v788 = vmul.f32 %v773, %v786
  %v789 = vmul.f32 %v774, %v786
  %v790 = vmul.f32 %v775, %v786
  %v791 = vmul.f32 %v776, %v786
  %v792 = vmul.f32 %v777, %v786
  %v793 = vmul.f32 %v778, %v786
  %v794 = vmul.f32 %v779, %v786
  %v795 = vmul.f32 %v780, %v786
  %796 = vadd.xlane.f32.xlu0 %v788
  %v797 = vpop.xlane.xlu0 %796
  %798 = vadd.xlane.f32.xlu0 %v789
  %v799 = vpop.xlane.xlu0 %798
  %800 = vadd.xlane.f32.xlu0 %v790
  %v801 = vpop.xlane.xlu0 %800
  %802 = vadd.xlane.f32.xlu0 %v791
  %v803 = vpop.xlane.xlu0 %802
  %804 = vadd.xlane.f32.xlu0 %v792
  %v805 = vpop.xlane.xlu0 %804
  %806 = vadd.xlane.f32.xlu0 %v793
  %v807 = vpop.xlane.xlu0 %806
  %808 = vadd.xlane.f32.xlu0 %v794
  %v809 = vpop.xlane.xlu0 %808
  %810 = vadd.xlane.f32.xlu0 %v795
  %v811 = vpop.xlane.xlu0 %810
  %v820 = vlaneseq
  %v821 = vand.u32 %v820, 127
  %v822 = vlaneseq
  %v823 = vshrl.u32 %v822, 7
  %v824 = vsub.s32 %v821, %v823
  %v825 = vrot.slane %v797, %v824
  %v826 = vlaneseq
  %v827 = vshrl.u32 %v826, 7
  %v828 = vsub.s32 %v821, %v827
  %v829 = vrot.slane %v799, %v828
  %v830 = vlaneseq
  %v831 = vshrl.u32 %v830, 7
  %v832 = vsub.s32 %v821, %v831
  %v833 = vrot.slane %v801, %v832
  %v834 = vlaneseq
  %v835 = vshrl.u32 %v834, 7
  %v836 = vsub.s32 %v821, %v835
  %v837 = vrot.slane %v803, %v836
  %v838 = vlaneseq
  %v839 = vshrl.u32 %v838, 7
  %v840 = vsub.s32 %v821, %v839
  %v841 = vrot.slane %v805, %v840
  %v842 = vlaneseq
  %v843 = vshrl.u32 %v842, 7
  %v844 = vsub.s32 %v821, %v843
  %v845 = vrot.slane %v807, %v844
  %v846 = vlaneseq
  %v847 = vshrl.u32 %v846, 7
  %v848 = vsub.s32 %v821, %v847
  %v849 = vrot.slane %v809, %v848
  %v850 = vlaneseq
  %v851 = vshrl.u32 %v850, 7
  %v852 = vsub.s32 %v821, %v851
  %v853 = vrot.slane %v811, %v852
  %vm854 = vcmask 1041409
  %v855 = vsel %vm854, %v829, %v825
  %vm856 = vcmask 1042434
  %v857 = vsel %vm856, %v833, %v855
  %vm858 = vcmask 1043459
  %v859 = vsel %vm858, %v837, %v857
  %vm860 = vcmask 1044484
  %v861 = vsel %vm860, %v841, %v859
  %vm862 = vcmask 1045509
  %v863 = vsel %vm862, %v845, %v861
  %vm864 = vcmask 1046534
  %v865 = vsel %vm864, %v849, %v863
  %vm866 = vcmask 1047559
  %v867 = vsel %vm866, %v853, %v865
  %869 = vxpose.xlu0.b32.start [1/16] %v867, 128
  %870 = vxpose.xlu0.b32.cont [2/16] 0.0, 128
  %871 = vxpose.xlu0.b32.cont [3/16] 0.0, 128
  %872 = vxpose.xlu0.b32.cont [4/16] 0.0, 128
  %873 = vxpose.xlu0.b32.cont [5/16] 0.0, 128
  %874 = vxpose.xlu0.b32.cont [6/16] 0.0, 128
  %875 = vxpose.xlu0.b32.cont [7/16] 0.0, 128
  %876 = vxpose.xlu0.b32.cont [8/16] 0.0, 128
  %877 = vxpose.xlu0.b32.cont [9/16] 0.0, 128
  %878 = vxpose.xlu0.b32.cont [10/16] 0.0, 128
  %879 = vxpose.xlu0.b32.cont [11/16] 0.0, 128
  %880 = vxpose.xlu0.b32.cont [12/16] 0.0, 128
  %881 = vxpose.xlu0.b32.cont [13/16] 0.0, 128
  %882 = vxpose.xlu0.b32.cont [14/16] 0.0, 128
  %883 = vxpose.xlu0.b32.cont [15/16] 0.0, 128
  %884 = vxpose.xlu0.b32.end [16/16] 0.0, 128
  %v885 = vpop.trf.xlu0
  %v886 = vpop.trf.xlu0
  %v887 = vpop.trf.xlu0
  %v888 = vpop.trf.xlu0
  %v889 = vpop.trf.xlu0
  %v890 = vpop.trf.xlu0
  %v891 = vpop.trf.xlu0
  %v892 = vpop.trf.xlu0
  %v893 = vpop.trf.xlu0
  %v894 = vpop.trf.xlu0
  %v895 = vpop.trf.xlu0
  %v896 = vpop.trf.xlu0
  %v897 = vpop.trf.xlu0
  %v898 = vpop.trf.xlu0
  %v899 = vpop.trf.xlu0
  %v900 = vpop.trf.xlu0
  %s901 = sld [smem:[#allocation4]]
  %v902 = vstv %s901
  %v903 = vadd.f32 %v885, %v902
  %vm904 = vcmask 64512
  %905 = vst.msk [vmem:[%s6] sm:$0xff] %vm904, %v903
  // Predicated region
  $region30: #{rnn_forward.1} parent=0 // pred_check
    _
  $region31: #{rnn_forward.1} parent=0 // pred_check_branch
    %907 = sbr.rel (0) target = $region33
  $region32: #{rnn_forward.1} parent=0 // pred_region
    _
  $region33: #{rnn_forward.1} parent=0 // pred_fallthru
    _
  // Predicated region
  $region34: #{rnn_forward.1} parent=0 // pred_check
    _
  $region35: #{rnn_forward.1} parent=0 // pred_check_branch
    %909 = sbr.rel (0) target = $region37
  $region36: #{rnn_forward.1} parent=0 // pred_region
    _
  $region37: #{rnn_forward.1} parent=0 // pred_fallthru
    _

</llo_original>
